<compile_context>
chip_gen: v6e
topology: v6e:2x2x1
jax: 0.10.0
libtpu: 0.0.40
codegen_flags: <defaults>
</compile_context>

<pallas_src>
import functools

import jax
import jax.numpy as jnp
from jax.experimental import pallas as pl
from jax.experimental.pallas import tpu as pltpu

NHIDDEN1 = 256
NHIDDEN2 = 256


def _round_up(a, m):
    return (a + m - 1) // m * m


def mlp_mse_kernel(x_ref, gt_ref, w1_ref, b1_ref, w2_ref, b2_ref, w3_ref, b3_ref,
                   psum_ref, *, tile_b, valid_b):
    # Hot path: 3 bf16 MXU matmuls with f32 accumulation + VPU bias/relu, all in VMEM.
    x = x_ref[...]                                      # bf16 tile (tile_b, in)
    h1 = jnp.dot(x, w1_ref[...], preferred_element_type=jnp.float32) + b1_ref[...]
    h1 = jnp.maximum(h1, 0.0).astype(jnp.bfloat16)
    h2 = jnp.dot(h1, w2_ref[...], preferred_element_type=jnp.float32) + b2_ref[...]
    h2 = jnp.maximum(h2, 0.0).astype(jnp.bfloat16)
    pred = jnp.dot(h2, w3_ref[...], preferred_element_type=jnp.float32) + b3_ref[...]

    diff = pred - gt_ref[...]                           # f32
    sq = diff * diff

    # Static check: only mask if the (padded) batch isn't a multiple of the tile.
    if valid_b % tile_b != 0:
        row = pl.program_id(0) * tile_b + jax.lax.broadcasted_iota(jnp.int32, sq.shape, 0)
        sq = jnp.where(row < valid_b, sq, 0.0)

    # Per-tile partial sum of squared errors, written as a lane-dense (8,128) block
    # (scalar broadcast -> unmasked vector store). Final mean happens in the wrapper.
    partial = jnp.sum(sq)
    psum_ref[...] = jnp.broadcast_to(partial, (8, 128))


def mlp_mse(x, gt, params, *, tile_b=128):
    w1, b1, w2, b2, w3, b3 = params
    B, infeature = x.shape
    outfeature = gt.shape[1]

    # Pick a batch tile and zero-pad the batch up to a multiple of it.
    tb = min(tile_b, _round_up(B, 8))
    Bp = _round_up(B, tb)
    if Bp != B:
        x = jnp.pad(x, ((0, Bp - B), (0, 0)))
        gt = jnp.pad(gt, ((0, Bp - B), (0, 0)))
    num_tiles = Bp // tb

    # bf16 operands for the MXU; biases stay f32 (added to the f32 accumulator).
    x_bf16 = x.astype(jnp.bfloat16)
    w1b, w2b, w3b = (w.astype(jnp.bfloat16) for w in (w1, w2, w3))

    kernel = functools.partial(mlp_mse_kernel, tile_b=tb, valid_b=B)
    const = lambda i: (0, 0)  # weights/biases stay resident across grid steps

    partials = pl.pallas_call(
        kernel,
        out_shape=jax.ShapeDtypeStruct((num_tiles * 8, 128), jnp.float32),
        grid=(num_tiles,),
        in_specs=[
            pl.BlockSpec((tb, infeature), lambda i: (i, 0)),      # x tile
            pl.BlockSpec((tb, outfeature), lambda i: (i, 0)),     # gt tile
            pl.BlockSpec((infeature, NHIDDEN1), const),           # w1 (resident)
            pl.BlockSpec((1, NHIDDEN1), const),                   # b1
            pl.BlockSpec((NHIDDEN1, NHIDDEN2), const),            # w2
            pl.BlockSpec((1, NHIDDEN2), const),                   # b2
            pl.BlockSpec((NHIDDEN2, outfeature), const),          # w3
            pl.BlockSpec((1, outfeature), const),                 # b3
        ],
        out_specs=pl.BlockSpec((8, 128), lambda i: (i, 0)),
        compiler_params=pltpu.CompilerParams(
            dimension_semantics=("parallel",)),                   # megacore-friendly
    )(x_bf16, gt, w1b, b1, w2b, b2, w3b, b3)

    # Each (8,128) block holds the same per-tile partial sum; pick one lane per tile.
    total = jnp.sum(partials[::8, 0])
    # MSELoss (reduction='mean'): 1/n is a trace-time constant -> multiply, not divide.
    return total * (1.0 / (B * outfeature))


def init_params(key, infeature, outfeature):
    k1, k2, k3 = jax.random.split(key, 3)
    # Deterministic synthetic init (scaled normal); weights stored as [in, out].
    w1 = jax.random.normal(k1, (infeature, NHIDDEN1), jnp.float32) / jnp.sqrt(infeature)
    b1 = jnp.zeros((1, NHIDDEN1), jnp.float32)
    w2 = jax.random.normal(k2, (NHIDDEN1, NHIDDEN2), jnp.float32) / jnp.sqrt(NHIDDEN1)
    b2 = jnp.zeros((1, NHIDDEN2), jnp.float32)
    w3 = jax.random.normal(k3, (NHIDDEN2, outfeature), jnp.float32) / jnp.sqrt(NHIDDEN2)
    b3 = jnp.zeros((1, outfeature), jnp.float32)
    return (w1, b1, w2, b2, w3, b3)


def reference(x, gt, params):
    # Pure-JAX f32 reference of the PyTorch forward (MLP + mean-squared-error).
    w1, b1, w2, b2, w3, b3 = params
    h1 = jnp.maximum(x @ w1 + b1, 0.0)
    h2 = jnp.maximum(h1 @ w2 + b2, 0.0)
    pred = h2 @ w3 + b3
    return jnp.mean((pred - gt) ** 2)


if __name__ == "__main__":
    infeature, outfeature = 32, 16
    key = jax.random.PRNGKey(0)
    kx1, kgt1, kx2, kgt2, kp = jax.random.split(key, 5)

    params = init_params(kp, infeature, outfeature)

    # Case 1: batch divisible by the tile -> 2-step grid, no in-kernel masking.
    B1 = 64
    x1 = jax.random.normal(kx1, (B1, infeature), jnp.float32)
    gt1 = jax.random.normal(kgt1, (B1, outfeature), jnp.float32)
    loss1 = mlp_mse(x1, gt1, params, tile_b=32)
    jax.block_until_ready(loss1)
    ref1 = reference(x1, gt1, params)
    # bf16 MXU operands (f32 accumulate) -> tolerance loosened vs the f32 reference.
    assert jnp.allclose(loss1, ref1, rtol=3e-2, atol=1e-3), (loss1, ref1)

    # Case 2: ragged batch -> zero-padded tiles + in-kernel row masking.
    B2 = 40
    x2 = jax.random.normal(kx2, (B2, infeature), jnp.float32)
    gt2 = jax.random.normal(kgt2, (B2, outfeature), jnp.float32)
    loss2 = mlp_mse(x2, gt2, params, tile_b=32)
    jax.block_until_ready(loss2)
    ref2 = reference(x2, gt2, params)
    assert jnp.allclose(loss2, ref2, rtol=3e-2, atol=1e-3), (loss2, ref2)

    print("KERNEL_OK")
</pallas_src>

<mosaic_0001>
module attributes {stable_mosaic.version = 11 : i64} {
  func.func @mlp_mse_kernel(%arg0: i32, %arg1: memref<32x32xbf16, #tpu.memory_space<vmem>>, %arg2: memref<32x16xf32, #tpu.memory_space<vmem>>, %arg3: memref<32x256xbf16, #tpu.memory_space<vmem>>, %arg4: memref<1x256xf32, #tpu.memory_space<vmem>>, %arg5: memref<256x256xbf16, #tpu.memory_space<vmem>>, %arg6: memref<1x256xf32, #tpu.memory_space<vmem>>, %arg7: memref<256x16xbf16, #tpu.memory_space<vmem>>, %arg8: memref<1x16xf32, #tpu.memory_space<vmem>>, %arg9: memref<8x128xf32, #tpu.memory_space<vmem>>) attributes {dimension_semantics = [#tpu.dimension_semantics<parallel>], iteration_bounds = array<i64: 2>, scalar_prefetch = 0 : i64, scratch_operands = 0 : i64, tpu.core_type = #tpu.core_type<tc>, window_params = [{transform_indices = @transform_0, window_bounds = array<i64: 32, 32>}, {transform_indices = @transform_1, window_bounds = array<i64: 32, 16>}, {pipeline_mode = #tpu.pipeline_mode<synchronous>, transform_indices = @transform_2, window_bounds = array<i64: 32, 256>}, {pipeline_mode = #tpu.pipeline_mode<synchronous>, transform_indices = @transform_3, window_bounds = array<i64: 1, 256>}, {pipeline_mode = #tpu.pipeline_mode<synchronous>, transform_indices = @transform_4, window_bounds = array<i64: 256, 256>}, {pipeline_mode = #tpu.pipeline_mode<synchronous>, transform_indices = @transform_5, window_bounds = array<i64: 1, 256>}, {pipeline_mode = #tpu.pipeline_mode<synchronous>, transform_indices = @transform_6, window_bounds = array<i64: 256, 16>}, {pipeline_mode = #tpu.pipeline_mode<synchronous>, transform_indices = @transform_7, window_bounds = array<i64: 1, 16>}, {transform_indices = @transform_8, window_bounds = array<i64: 8, 128>}]} {
    %c0 = arith.constant 0 : index
    %c0_0 = arith.constant 0 : index
    %0 = vector.load %arg1[%c0, %c0_0] : memref<32x32xbf16, #tpu.memory_space<vmem>>, vector<32x32xbf16>
    %c0_1 = arith.constant 0 : index
    %c0_2 = arith.constant 0 : index
    %1 = vector.load %arg3[%c0_1, %c0_2] : memref<32x256xbf16, #tpu.memory_space<vmem>>, vector<32x256xbf16>
    %cst = arith.constant dense<0.000000e+00> : vector<32x256xf32>
    %2 = tpu.matmul %0, %1, %cst {dimension_numbers = #tpu.dot_dimension_numbers<[1], [0], [0], [1], [0, 0, 1, 1], [], []>} : vector<32x32xbf16>, vector<32x256xbf16>, vector<32x256xf32> -> vector<32x256xf32>
    %c0_3 = arith.constant 0 : index
    %c0_4 = arith.constant 0 : index
    %3 = vector.load %arg4[%c0_3, %c0_4] : memref<1x256xf32, #tpu.memory_space<vmem>>, vector<1x256xf32>
    %4 = vector.broadcast %3 : vector<1x256xf32> to vector<32x256xf32>
    %5 = arith.addf %2, %4 : vector<32x256xf32>
    %cst_5 = arith.constant 0.000000e+00 : f32
    %6 = vector.broadcast %cst_5 : f32 to vector<32x256xf32>
    %7 = arith.maximumf %5, %6 : vector<32x256xf32>
    %8 = arith.truncf %7 : vector<32x256xf32> to vector<32x256xbf16>
    %c0_6 = arith.constant 0 : index
    %c0_7 = arith.constant 0 : index
    %9 = vector.load %arg5[%c0_6, %c0_7] : memref<256x256xbf16, #tpu.memory_space<vmem>>, vector<256x256xbf16>
    %cst_8 = arith.constant dense<0.000000e+00> : vector<32x256xf32>
    %10 = tpu.matmul %8, %9, %cst_8 {dimension_numbers = #tpu.dot_dimension_numbers<[1], [0], [0], [1], [0, 0, 1, 1], [], []>} : vector<32x256xbf16>, vector<256x256xbf16>, vector<32x256xf32> -> vector<32x256xf32>
    %c0_9 = arith.constant 0 : index
    %c0_10 = arith.constant 0 : index
    %11 = vector.load %arg6[%c0_9, %c0_10] : memref<1x256xf32, #tpu.memory_space<vmem>>, vector<1x256xf32>
    %12 = vector.broadcast %11 : vector<1x256xf32> to vector<32x256xf32>
    %13 = arith.addf %10, %12 : vector<32x256xf32>
    %cst_11 = arith.constant 0.000000e+00 : f32
    %14 = vector.broadcast %cst_11 : f32 to vector<32x256xf32>
    %15 = arith.maximumf %13, %14 : vector<32x256xf32>
    %16 = arith.truncf %15 : vector<32x256xf32> to vector<32x256xbf16>
    %c0_12 = arith.constant 0 : index
    %c0_13 = arith.constant 0 : index
    %17 = vector.load %arg7[%c0_12, %c0_13] : memref<256x16xbf16, #tpu.memory_space<vmem>>, vector<256x16xbf16>
    %cst_14 = arith.constant dense<0.000000e+00> : vector<32x16xf32>
    %18 = tpu.matmul %16, %17, %cst_14 {dimension_numbers = #tpu.dot_dimension_numbers<[1], [0], [0], [1], [0, 0, 1, 1], [], []>} : vector<32x256xbf16>, vector<256x16xbf16>, vector<32x16xf32> -> vector<32x16xf32>
    %c0_15 = arith.constant 0 : index
    %c0_16 = arith.constant 0 : index
    %19 = vector.load %arg8[%c0_15, %c0_16] : memref<1x16xf32, #tpu.memory_space<vmem>>, vector<1x16xf32>
    %20 = vector.broadcast %19 : vector<1x16xf32> to vector<32x16xf32>
    %21 = arith.addf %18, %20 : vector<32x16xf32>
    %c0_17 = arith.constant 0 : index
    %c0_18 = arith.constant 0 : index
    %22 = vector.load %arg2[%c0_17, %c0_18] : memref<32x16xf32, #tpu.memory_space<vmem>>, vector<32x16xf32>
    %23 = arith.subf %21, %22 : vector<32x16xf32>
    %24 = arith.mulf %23, %23 : vector<32x16xf32>
    %25 = vector.shape_cast %24 : vector<32x16xf32> to vector<1x32x16xf32>
    %cst_19 = arith.constant dense<0.000000e+00> : vector<1xf32>
    %26 = vector.multi_reduction <add>, %25, %cst_19 [1, 2] : vector<1x32x16xf32> to vector<1xf32>
    %27 = vector.shape_cast %26 : vector<1xf32> to vector<1x1x1xf32>
    %28 = vector.extract %27[0, 0, 0] : f32 from vector<1x1x1xf32>
    %29 = vector.broadcast %28 : f32 to vector<8x128xf32>
    %c0_20 = arith.constant 0 : index
    %c0_21 = arith.constant 0 : index
    %30 = vector.load %arg9[%c0_20, %c0_21] : memref<8x128xf32, #tpu.memory_space<vmem>>, vector<8x128xf32>
    tpu.vector_store %arg9[%c0_20, %c0_21], %29 {strides = array<i32>} : memref<8x128xf32, #tpu.memory_space<vmem>>, vector<8x128xf32>,
    return
  }
  func.func @transform_0(%arg0: i32) -> (i32, i32) {
    %c0_i32 = arith.constant 0 : i32
    %c0_i32_0 = arith.constant 0 : i32
    return %arg0, %c0_i32 : i32, i32
  }
  func.func @transform_1(%arg0: i32) -> (i32, i32) {
    %c0_i32 = arith.constant 0 : i32
    %c0_i32_0 = arith.constant 0 : i32
    return %arg0, %c0_i32 : i32, i32
  }
  func.func @transform_2(%arg0: i32) -> (i32, i32) {
    %c0_i32 = arith.constant 0 : i32
    %c0_i32_0 = arith.constant 0 : i32
    %c0_i32_1 = arith.constant 0 : i32
    return %c0_i32, %c0_i32_0 : i32, i32
  }
  func.func @transform_3(%arg0: i32) -> (i32, i32) {
    %c0_i32 = arith.constant 0 : i32
    %c0_i32_0 = arith.constant 0 : i32
    %c0_i32_1 = arith.constant 0 : i32
    return %c0_i32, %c0_i32_0 : i32, i32
  }
  func.func @transform_4(%arg0: i32) -> (i32, i32) {
    %c0_i32 = arith.constant 0 : i32
    %c0_i32_0 = arith.constant 0 : i32
    %c0_i32_1 = arith.constant 0 : i32
    return %c0_i32, %c0_i32_0 : i32, i32
  }
  func.func @transform_5(%arg0: i32) -> (i32, i32) {
    %c0_i32 = arith.constant 0 : i32
    %c0_i32_0 = arith.constant 0 : i32
    %c0_i32_1 = arith.constant 0 : i32
    return %c0_i32, %c0_i32_0 : i32, i32
  }
  func.func @transform_6(%arg0: i32) -> (i32, i32) {
    %c0_i32 = arith.constant 0 : i32
    %c0_i32_0 = arith.constant 0 : i32
    %c0_i32_1 = arith.constant 0 : i32
    return %c0_i32, %c0_i32_0 : i32, i32
  }
  func.func @transform_7(%arg0: i32) -> (i32, i32) {
    %c0_i32 = arith.constant 0 : i32
    %c0_i32_0 = arith.constant 0 : i32
    %c0_i32_1 = arith.constant 0 : i32
    return %c0_i32, %c0_i32_0 : i32, i32
  }
  func.func @transform_8(%arg0: i32) -> (i32, i32) {
    %c0_i32 = arith.constant 0 : i32
    %c0_i32_0 = arith.constant 0 : i32
    return %arg0, %c0_i32 : i32, i32
  }
}

</mosaic_0001>

<llo_original>
// kernel: tpu_custom_call.1
$region0: #{tpu_custom_call.1}
  #allocation0 [shape = 'u32[]', space=smem, size = 0x4, offset = 0x4, fixed_abs, tag = 'smem constant byte address 0x4 - core index']
  #allocation1 [shape = 'u32[144,128]{1,0:T(1,128)}', space=vmem, size = 0x12000, scoped, tag = 'internal scratch']
  %s0 = inlined_call_operand.vmem [shape: bf16[64,32], index: 0, kind: input, shape index: {}]
  %s1 = inlined_call_operand.vmem [shape: f32[64,16], index: 1, kind: input, shape index: {}]
  %s2 = inlined_call_operand.hbm [shape: bf16[32,256], index: 2, kind: input, shape index: {}]
  %s3 = inlined_call_operand.vmem [shape: f32[1,256], index: 3, kind: input, shape index: {}]
  %s4 = inlined_call_operand.vmem [shape: bf16[256,256], index: 4, kind: input, shape index: {}]
  %s5 = inlined_call_operand.vmem [shape: f32[1,256], index: 5, kind: input, shape index: {}]
  %s6 = inlined_call_operand.vmem [shape: bf16[256,16], index: 6, kind: input, shape index: {}]
  %s7 = inlined_call_operand.vmem [shape: f32[1,16], index: 7, kind: input, shape index: {}]
  %s8 = inlined_call_operand.hbm [shape: f32[16,128], index: 8, kind: output, shape index: {}]
  %s9 = sld [smem:[#allocation0]]
  $region69: #{tpu_custom_call.1} parent=0
    _
  %s11 = ssub.s32 1, %s9
  %s12 = scalar_select 0, %s11, %s9
  $region1: #{tpu_custom_call.1} parent=0
    #allocation2 [shape = 'u8[16384]{0}', space=vmem, size = 0x4000, scoped, tag = 'input window, operand 2, single buffered']
    #allocation3 [shape = 's32[2]{0}', space=sflag, size = 0x8, scoped, tag = 'scoped memory for tpu_custom_call.1']
    #allocation4 [shape = 's32[2]{0}', space=sflag, size = 0x8, scoped, tag = 'scoped memory for tpu_custom_call.1']
    #allocation5 [shape = 'u8[8192]{0}', space=vmem, size = 0x2000, scoped, tag = 'output window, operand 0']
    %13 = vsyncpa [#allocation3], 0
    %14 = vsyncpa [#allocation4], 0
    %s15 = scalar_lea.sflag [#allocation4], 1
    %16 = vsyncpa %s15, 0
    loop: start=0, step=1, limit=4
    $region2: #{tpu_custom_call.1} parent=1 // loop_pre_header
      _
    $region3: #{tpu_custom_call.1} parent=1 // loop_header
      %s18 = sphi 0, %s22
      %p19 = scmp.ge.s32.totalorder %s18, 4
      %s28 = sphi 0, %s30
      %s31 = sphi 0, %s28
      %s32 = sphi 0, %s31
      %s48 = sphi 0, %s32
      %s54 = sphi 0, %s56
      %s57 = sphi 0, %s54
      %s58 = sphi 0, %s57
      %s74 = sphi 0, %s58
      %s78 = sphi 0, %s78
      %s80 = sphi 0, %s78
      %s81 = sphi 0, %s80
      %s95 = sphi 0, %s81
      %s99 = sphi 0, %s99
      %s101 = sphi 0, %s99
      %s102 = sphi 0, %s101
      %s116 = sphi 0, %s102
      %s120 = sphi 0, %s120
      %s122 = sphi 0, %s120
      %s123 = sphi 0, %s122
      %s137 = sphi 0, %s123
      %s141 = sphi 0, %s141
      %s143 = sphi 0, %s141
      %s144 = sphi 0, %s143
      %s158 = sphi 0, %s144
      %s162 = sphi 0, %s162
      %s164 = sphi 0, %s162
      %s165 = sphi 0, %s164
      %s179 = sphi 0, %s165
      %s183 = sphi 0, %s183
      %s185 = sphi 0, %s183
      %s186 = sphi 0, %s185
      %s200 = sphi 0, %s186
      %s206 = sphi 0, %s208
      %s209 = sphi 0, %s206
      %s210 = sphi 0, %s209
      %s226 = sphi 0, %s210
    $region4: #{tpu_custom_call.1} parent=1 // loop_header_branch
      %21 = sbr.rel (%p19) target = $region8
    $region5: #{tpu_custom_call.1} parent=1 // loop_body
      %s23 = ssub.s32 %s18, 1
      %s24 = ssub.s32 %s18, 2
      %s25 = sadd.s32 %s18, 1
      %s26 = ssub.s32 %s18, %s25
      %p27 = scmp.eq.s32.totalorder %s26, 0
      %s29 = sadd.s32 %s28, 1
      %s30 = scalar_select %p27, %s28, %s29
      %p33 = pneg %p27
      %p34 = scmp.eq.s32.totalorder %s18, 1
      %p35 = por %p33, %p34
      %p36 = scmp.ne.s32.totalorder %s28, %s31
      %p37 = scmp.eq.s32.totalorder %s18, 0
      %p38 = por %p36, %p37
      %p39 = scmp.ne.s32.totalorder %s28, %s31
      %p40 = scmp.eq.s32.totalorder %s23, 1
      %p41 = por %p39, %p40
      %p42 = scmp.ne.s32.totalorder %s31, %s32
      %p43 = scmp.eq.s32.totalorder %s23, 0
      %p44 = por %p42, %p43
      %p45 = scmp.ne.s32.totalorder %s31, %s32
      %p46 = scmp.eq.s32.totalorder %s24, 1
      %p47 = por %p45, %p46
      %p49 = scmp.ne.s32.totalorder %s32, %s48
      %p50 = scmp.eq.s32.totalorder %s24, 0
      %p51 = por %p49, %p50
      %s52 = ssub.s32 %s18, %s25
      %p53 = scmp.eq.s32.totalorder %s52, 0
      %s55 = sadd.s32 %s54, 1
      %s56 = scalar_select %p53, %s54, %s55
      %p59 = pneg %p53
      %p60 = scmp.eq.s32.totalorder %s18, 1
      %p61 = por %p59, %p60
      %p62 = scmp.ne.s32.totalorder %s54, %s57
      %p63 = scmp.eq.s32.totalorder %s18, 0
      %p64 = por %p62, %p63
      %p65 = scmp.ne.s32.totalorder %s54, %s57
      %p66 = scmp.eq.s32.totalorder %s23, 1
      %p67 = por %p65, %p66
      %p68 = scmp.ne.s32.totalorder %s57, %s58
      %p69 = scmp.eq.s32.totalorder %s23, 0
      %p70 = por %p68, %p69
      %p71 = scmp.ne.s32.totalorder %s57, %s58
      %p72 = scmp.eq.s32.totalorder %s24, 1
      %p73 = por %p71, %p72
      %p75 = scmp.ne.s32.totalorder %s58, %s74
      %p76 = scmp.eq.s32.totalorder %s24, 0
      %p77 = por %p75, %p76
      %s79 = sadd.s32 %s78, 1
      %p82 = scmp.eq.s32.totalorder %s18, 1
      %p83 = scmp.ne.s32.totalorder %s78, %s80
      %p84 = scmp.eq.s32.totalorder %s18, 0
      %p85 = por %p83, %p84
      %p86 = scmp.ne.s32.totalorder %s78, %s80
      %p87 = scmp.eq.s32.totalorder %s23, 1
      %p88 = por %p86, %p87
      %p89 = scmp.ne.s32.totalorder %s80, %s81
      %p90 = scmp.eq.s32.totalorder %s23, 0
      %p91 = por %p89, %p90
      %p92 = scmp.ne.s32.totalorder %s80, %s81
      %p93 = scmp.eq.s32.totalorder %s24, 1
      %p94 = por %p92, %p93
      %p96 = scmp.ne.s32.totalorder %s81, %s95
      %p97 = scmp.eq.s32.totalorder %s24, 0
      %p98 = por %p96, %p97
      %s100 = sadd.s32 %s99, 1
      %p103 = scmp.eq.s32.totalorder %s18, 1
      %p104 = scmp.ne.s32.totalorder %s99, %s101
      %p105 = scmp.eq.s32.totalorder %s18, 0
      %p106 = por %p104, %p105
      %p107 = scmp.ne.s32.totalorder %s99, %s101
      %p108 = scmp.eq.s32.totalorder %s23, 1
      %p109 = por %p107, %p108
      %p110 = scmp.ne.s32.totalorder %s101, %s102
      %p111 = scmp.eq.s32.totalorder %s23, 0
      %p112 = por %p110, %p111
      %p113 = scmp.ne.s32.totalorder %s101, %s102
      %p114 = scmp.eq.s32.totalorder %s24, 1
      %p115 = por %p113, %p114
      %p117 = scmp.ne.s32.totalorder %s102, %s116
      %p118 = scmp.eq.s32.totalorder %s24, 0
      %p119 = por %p117, %p118
      %s121 = sadd.s32 %s120, 1
      %p124 = scmp.eq.s32.totalorder %s18, 1
      %p125 = scmp.ne.s32.totalorder %s120, %s122
      %p126 = scmp.eq.s32.totalorder %s18, 0
      %p127 = por %p125, %p126
      %p128 = scmp.ne.s32.totalorder %s120, %s122
      %p129 = scmp.eq.s32.totalorder %s23, 1
      %p130 = por %p128, %p129
      %p131 = scmp.ne.s32.totalorder %s122, %s123
      %p132 = scmp.eq.s32.totalorder %s23, 0
      %p133 = por %p131, %p132
      %p134 = scmp.ne.s32.totalorder %s122, %s123
      %p135 = scmp.eq.s32.totalorder %s24, 1
      %p136 = por %p134, %p135
      %p138 = scmp.ne.s32.totalorder %s123, %s137
      %p139 = scmp.eq.s32.totalorder %s24, 0
      %p140 = por %p138, %p139
      %s142 = sadd.s32 %s141, 1
      %p145 = scmp.eq.s32.totalorder %s18, 1
      %p146 = scmp.ne.s32.totalorder %s141, %s143
      %p147 = scmp.eq.s32.totalorder %s18, 0
      %p148 = por %p146, %p147
      %p149 = scmp.ne.s32.totalorder %s141, %s143
      %p150 = scmp.eq.s32.totalorder %s23, 1
      %p151 = por %p149, %p150
      %p152 = scmp.ne.s32.totalorder %s143, %s144
      %p153 = scmp.eq.s32.totalorder %s23, 0
      %p154 = por %p152, %p153
      %p155 = scmp.ne.s32.totalorder %s143, %s144
      %p156 = scmp.eq.s32.totalorder %s24, 1
      %p157 = por %p155, %p156
      %p159 = scmp.ne.s32.totalorder %s144, %s158
      %p160 = scmp.eq.s32.totalorder %s24, 0
      %p161 = por %p159, %p160
      %s163 = sadd.s32 %s162, 1
      %p166 = scmp.eq.s32.totalorder %s18, 1
      %p167 = scmp.ne.s32.totalorder %s162, %s164
      %p168 = scmp.eq.s32.totalorder %s18, 0
      %p169 = por %p167, %p168
      %p170 = scmp.ne.s32.totalorder %s162, %s164
      %p171 = scmp.eq.s32.totalorder %s23, 1
      %p172 = por %p170, %p171
      %p173 = scmp.ne.s32.totalorder %s164, %s165
      %p174 = scmp.eq.s32.totalorder %s23, 0
      %p175 = por %p173, %p174
      %p176 = scmp.ne.s32.totalorder %s164, %s165
      %p177 = scmp.eq.s32.totalorder %s24, 1
      %p178 = por %p176, %p177
      %p180 = scmp.ne.s32.totalorder %s165, %s179
      %p181 = scmp.eq.s32.totalorder %s24, 0
      %p182 = por %p180, %p181
      %s184 = sadd.s32 %s183, 1
      %p187 = scmp.eq.s32.totalorder %s18, 1
      %p188 = scmp.ne.s32.totalorder %s183, %s185
      %p189 = scmp.eq.s32.totalorder %s18, 0
      %p190 = por %p188, %p189
      %p191 = scmp.ne.s32.totalorder %s183, %s185
      %p192 = scmp.eq.s32.totalorder %s23, 1
      %p193 = por %p191, %p192
      %p194 = scmp.ne.s32.totalorder %s185, %s186
      %p195 = scmp.eq.s32.totalorder %s23, 0
      %p196 = por %p194, %p195
      %p197 = scmp.ne.s32.totalorder %s185, %s186
      %p198 = scmp.eq.s32.totalorder %s24, 1
      %p199 = por %p197, %p198
      %p201 = scmp.ne.s32.totalorder %s186, %s200
      %p202 = scmp.eq.s32.totalorder %s24, 0
      %p203 = por %p201, %p202
      %s204 = ssub.s32 %s18, %s25
      %p205 = scmp.eq.s32.totalorder %s204, 0
      %s207 = sadd.s32 %s206, 1
      %s208 = scalar_select %p205, %s206, %s207
      %p211 = pneg %p205
      %p212 = scmp.eq.s32.totalorder %s18, 1
      %p213 = por %p211, %p212
      %p214 = scmp.ne.s32.totalorder %s206, %s209
      %p215 = scmp.eq.s32.totalorder %s18, 0
      %p216 = por %p214, %p215
      %p217 = scmp.ne.s32.totalorder %s206, %s209
      %p218 = scmp.eq.s32.totalorder %s23, 1
      %p219 = por %p217, %p218
      %p220 = scmp.ne.s32.totalorder %s209, %s210
      %p221 = scmp.eq.s32.totalorder %s23, 0
      %p222 = por %p220, %p221
      %p223 = scmp.ne.s32.totalorder %s209, %s210
      %p224 = scmp.eq.s32.totalorder %s24, 1
      %p225 = por %p223, %p224
      %p227 = scmp.ne.s32.totalorder %s210, %s226
      %p228 = scmp.eq.s32.totalorder %s24, 0
      %p229 = por %p227, %p228
      %p230 = scmp.le.s32.totalorder 1, %s18
      %p231 = scmp.lt.s32.totalorder %s18, 3
      %p232 = pnand %p230, %p231
      %p233 = pneg %p232
      // Predicated region
      $region9: #{tpu_custom_call.1} parent=5 // pred_check
        _
      $region10: #{tpu_custom_call.1} parent=5 // pred_check_branch
        %235 = sbr.rel (%p232) target = $region12
      $region11: #{tpu_custom_call.1} parent=5 // pred_region
        %s236 = ssub.s32 %s18, 1
        // Predicated region
        $region13: #{tpu_custom_call.1} parent=11 // pred_check
          %p237 = pneg %p91
        $region14: #{tpu_custom_call.1} parent=11 // pred_check_branch
          %239 = sbr.rel (%p237) target = $region16
        $region15: #{tpu_custom_call.1} parent=11 // pred_region
          %s241 = ssub.s32 512, 512
          %242 = vsyncadd [#allocation3], %s241
          %s243 = sshll.u32 [#allocation2], 4
          %s244 = int_to_ptr.vmem [resolvable:$true] %s243
          %249 = dma.hbm_to_vmem [thread:$0]  %s2, 512, %s244, [#allocation3], 128, 128, 8
        $region16: #{tpu_custom_call.1} parent=11 // pred_fallthru
          _
        // Predicated region
        $region17: #{tpu_custom_call.1} parent=11 // pred_check
          %p250 = pneg %p112
        $region18: #{tpu_custom_call.1} parent=11 // pred_check_branch
          %252 = sbr.rel (%p250) target = $region20
        $region19: #{tpu_custom_call.1} parent=11 // pred_region
          _
        $region20: #{tpu_custom_call.1} parent=11 // pred_fallthru
          _
        // Predicated region
        $region21: #{tpu_custom_call.1} parent=11 // pred_check
          %p253 = pneg %p133
        $region22: #{tpu_custom_call.1} parent=11 // pred_check_branch
          %255 = sbr.rel (%p253) target = $region24
        $region23: #{tpu_custom_call.1} parent=11 // pred_region
          _
        $region24: #{tpu_custom_call.1} parent=11 // pred_fallthru
          _
        // Predicated region
        $region25: #{tpu_custom_call.1} parent=11 // pred_check
          %p256 = pneg %p154
        $region26: #{tpu_custom_call.1} parent=11 // pred_check_branch
          %258 = sbr.rel (%p256) target = $region28
        $region27: #{tpu_custom_call.1} parent=11 // pred_region
          _
        $region28: #{tpu_custom_call.1} parent=11 // pred_fallthru
          _
        // Predicated region
        $region29: #{tpu_custom_call.1} parent=11 // pred_check
          %p259 = pneg %p175
        $region30: #{tpu_custom_call.1} parent=11 // pred_check_branch
          %261 = sbr.rel (%p259) target = $region32
        $region31: #{tpu_custom_call.1} parent=11 // pred_region
          _
        $region32: #{tpu_custom_call.1} parent=11 // pred_fallthru
          _
        // Predicated region
        $region33: #{tpu_custom_call.1} parent=11 // pred_check
          %p262 = pneg %p196
        $region34: #{tpu_custom_call.1} parent=11 // pred_check_branch
          %264 = sbr.rel (%p262) target = $region36
        $region35: #{tpu_custom_call.1} parent=11 // pred_region
          _
        $region36: #{tpu_custom_call.1} parent=11 // pred_fallthru
          _
      $region12: #{tpu_custom_call.1} parent=5 // pred_fallthru
        _
      %p265 = scmp.lt.s32.totalorder %s18, 2
      // Predicated region
      $region37: #{tpu_custom_call.1} parent=5 // pred_check
        %p266 = pneg %p265
      $region38: #{tpu_custom_call.1} parent=5 // pred_check_branch
        %268 = sbr.rel (%p266) target = $region40
      $region39: #{tpu_custom_call.1} parent=5 // pred_region
        // Predicated region
        $region41: #{tpu_custom_call.1} parent=39 // pred_check
          %p269 = pneg %p38
        $region42: #{tpu_custom_call.1} parent=39 // pred_check_branch
          %271 = sbr.rel (%p269) target = $region44
        $region43: #{tpu_custom_call.1} parent=39 // pred_region
          %s272 = smul.u32 4, %s18
          %p273 = scmp.lt.s32.totalorder %s272, 7
          %s274 = scalar_select %p273, %s272, 7
          %s275 = smul.addr %s274, 4
          %s276 = scalar_lea.vmem %s0, %s275
          %s277 = smul.u32 4, %s18
        $region44: #{tpu_custom_call.1} parent=39 // pred_fallthru
          _
        // Predicated region
        $region45: #{tpu_custom_call.1} parent=39 // pred_check
          %p278 = pneg %p64
        $region46: #{tpu_custom_call.1} parent=39 // pred_check_branch
          %280 = sbr.rel (%p278) target = $region48
        $region47: #{tpu_custom_call.1} parent=39 // pred_region
          %s281 = smul.u32 4, %s18
          %p282 = scmp.lt.s32.totalorder %s281, 7
          %s283 = scalar_select %p282, %s281, 7
          %s284 = smul.addr %s283, 8
          %s285 = scalar_lea.vmem %s1, %s284
          %s286 = smul.u32 4, %s18
        $region48: #{tpu_custom_call.1} parent=39 // pred_fallthru
          _
      $region40: #{tpu_custom_call.1} parent=5 // pred_fallthru
        _
      %p287 = scmp.le.s32.totalorder 1, %s18
      %p288 = scmp.lt.s32.totalorder %s18, 3
      %p289 = pnand %p287, %p288
      %p290 = pneg %p289
      // Predicated region
      $region49: #{tpu_custom_call.1} parent=5 // pred_check
        _
      $region50: #{tpu_custom_call.1} parent=5 // pred_check_branch
        %292 = sbr.rel (%p289) target = $region52
      $region51: #{tpu_custom_call.1} parent=5 // pred_region
        %s293 = ssub.s32 %s18, 1
        // Predicated region
        $region53: #{tpu_custom_call.1} parent=51 // pred_check
          %p294 = pneg %p91
        $region54: #{tpu_custom_call.1} parent=51 // pred_check_branch
          %296 = sbr.rel (%p294) target = $region56
        $region55: #{tpu_custom_call.1} parent=51 // pred_region
          %297 = dma.done [#allocation3], 512
        $region56: #{tpu_custom_call.1} parent=51 // pred_fallthru
          _
        %s298 = smul.u32 4, %s23
        %p299 = scmp.lt.s32.totalorder %s298, 7
        %s300 = scalar_select %p299, %s298, 7
        %s301 = smul.addr %s300, 4
        %s302 = scalar_lea.vmem %s0, %s301
        %p303 = pneg %p44
        %p304 = pneg %p41
        %s305 = smul.u32 4, %s23
        %p306 = scmp.lt.s32.totalorder %s305, 7
        %s307 = scalar_select %p306, %s305, 7
        %s308 = smul.addr %s307, 8
        %s309 = scalar_lea.vmem %s1, %s308
        %p310 = pneg %p70
        %p311 = pneg %p67
        %p312 = pneg %p91
        %p313 = pneg %p88
        %p314 = pneg %p112
        %p315 = pneg %p109
        %p316 = pneg %p133
        %p317 = pneg %p130
        %p318 = pneg %p154
        %p319 = pneg %p151
        %p320 = pneg %p175
        %p321 = pneg %p172
        %p322 = pneg %p196
        %p323 = pneg %p193
        %p324 = pneg %p222
        %p325 = pneg %p219
        %s326 = sand.u32 %s209, 1
        %s327 = scalar_lea.sflag [#allocation4], %s326
        %s328 = sand.u32 %s209, 1
        %s329 = smul.addr %s328, 8
        %s330 = scalar_lea.vmem [#allocation5], %s329
        %s331 = smul.u32 4, %s23
        %p332 = scmp.lt.s32.totalorder %s331, 7
        %s333 = scalar_select %p332, %s331, 7
        %s334 = smul.addr %s333, 4
        %s335 = scalar_lea.vmem %s0, %s334
        %s336 = smul.u32 4, %s23
        %s337 = smul.u32 4, %s23
        %p338 = scmp.lt.s32.totalorder %s337, 7
        %s339 = scalar_select %p338, %s337, 7
        %s340 = smul.addr %s339, 8
        %s341 = scalar_lea.vmem %s1, %s340
        %s342 = smul.u32 4, %s23
        %v344 = vld [vmem:[%s335] sm:$0xf]
        %v345 = vld [vmem:[%s335 + $0x4] sm:$0xf]
        %v346 = vld [vmem:[%s335 + $0x8] sm:$0xf]
        %v347 = vld [vmem:[%s335 + $0xc] sm:$0xf]
        %v348 = vld [vmem:[#allocation2] sm:$0xff]
        %v349 = vld [vmem:[#allocation2 + $0x8] sm:$0xff]
        %v350 = vld [vmem:[#allocation2 + $0x10] sm:$0xff]
        %v351 = vld [vmem:[#allocation2 + $0x18] sm:$0xff]
        %v352 = vld [vmem:[%s3] sm:$0x3]
        %v354 = vlaneseq
        %v355 = vshrl.u32 %v354, 7
        %v356 = vsub.s32 0, %v355
        %v357 = vrot.slane %v352, %v356
        %v358 = vlaneseq
        %v359 = vshrl.u32 %v358, 7
        %v360 = vsub.s32 1, %v359
        %v361 = vrot.slane %v352, %v360
        %v368 = vunpack.c.l.b16 %v344
        %v369 = vunpack.c.l.b16 %v345
        %v370 = vunpack.c.l.b16 %v346
        %v371 = vunpack.c.l.b16 %v347
        %v372 = vpack.c.b16 %v369, %v368
        %v373 = vpack.c.b16 %v371, %v370
        %v378 = vunpack.c.l.b16 %v348
        %v379 = vunpack.c.h.b16 %v348
        %v380 = vunpack.c.l.b16 %v349
        %v381 = vunpack.c.h.b16 %v349
        %v382 = vunpack.c.l.b16 %v350
        %v383 = vunpack.c.h.b16 %v350
        %v384 = vunpack.c.l.b16 %v351
        %v385 = vunpack.c.h.b16 %v351
        %v386 = vpack.c.b16 %v380, %v378
        %v387 = vpack.c.b16 %v381, %v379
        %v388 = vpack.c.b16 %v384, %v382
        %v389 = vpack.c.b16 %v385, %v383
        %vm394 = vcmask 261120
        %v396 = vsel %vm394, %v372, 0
        %v399 = vsel %vm394, %v373, 0
        %401 = vmatprep.subr.bf16.mxu0 0
        %402 = vmatpush1.bf16.msra.mxu0 0
        %403 = vmatprep.subr.bf16.mxu0 0
        %404 = vmatpush1.bf16.msra.mxu0 0
        %405 = vmatprep.subr.bf16.mxu0 0
        %406 = vmatpush1.bf16.msra.mxu0 0
        %407 = vmatprep.subr.bf16.mxu0 0
        %408 = vmatpush1.bf16.msra.mxu0 0
        %409 = vmatprep.subr.bf16.mxu0 0
        %410 = vmatpush1.bf16.msra.mxu0 0
        %411 = vmatprep.subr.bf16.mxu0 0
        %412 = vmatpush1.bf16.msra.mxu0 0
        %413 = vmatprep.subr.bf16.mxu0 %v389
        %414 = vmatpush1.bf16.msra.mxu0 %v388
        %415 = vmatprep.subr.bf16.mxu0 %v387
        %416 = vmatpush1.bf16.msra.mxu0 %v386
        %417 = vmatprep.subr.bf16.mxu0 0
        %418 = vmatpush2.bf16.msra.mxu0 0
        %419 = vmatprep.subr.bf16.mxu0 0
        %420 = vmatpush2.bf16.msra.mxu0 0
        %421 = vmatprep.subr.bf16.mxu0 0
        %422 = vmatpush2.bf16.msra.mxu0 0
        %423 = vmatprep.subr.bf16.mxu0 0
        %424 = vmatpush2.bf16.msra.mxu0 0
        %425 = vmatprep.subr.bf16.mxu0 0
        %426 = vmatpush2.bf16.msra.mxu0 0
        %427 = vmatprep.subr.bf16.mxu0 0
        %428 = vmatpush2.bf16.msra.mxu0 0
        %429 = vmatprep.subr.bf16.mxu0 0
        %430 = vmatpush2.bf16.msra.mxu0 0
        %431 = vmatprep.subr.bf16.mxu0 0
        %432 = vmatpush2.bf16.msra.mxu0 0
        %433 = vmatprep.mubr.bf16.mxu0 0
        %434 = vmatmul.mubr.bf16.gmra.mxu0 %v396
        %v435 = vpop.f32.mrf.mxu0
        %v436 = vadd.f32 %v357, %v435
        %v437 = vpop.f32.mrf.mxu0
        %v438 = vadd.f32 %v361, %v437
        %v439 = vpop.f32.mrf.mxu0
        %v440 = vadd.f32 %v357, %v439
        %v441 = vpop.f32.mrf.mxu0
        %v442 = vadd.f32 %v361, %v441
        %443 = vmatprep.mubr.bf16.mxu0 0
        %444 = vmatmul.mubr.bf16.gmra.mxu0 %v399
        %v445 = vpop.f32.mrf.mxu0
        %v446 = vadd.f32 %v357, %v445
        %v447 = vpop.f32.mrf.mxu0
        %v448 = vadd.f32 %v361, %v447
        %v449 = vpop.f32.mrf.mxu0
        %v450 = vadd.f32 %v357, %v449
        %v451 = vpop.f32.mrf.mxu0
        %v452 = vadd.f32 %v361, %v451
        %453 = vdwg.mxu0
        %v454 = vmax.f32 %v436, 0.0
        %v455 = vmax.f32 %v438, 0.0
        %v456 = vmax.f32 %v440, 0.0
        %v457 = vmax.f32 %v442, 0.0
        %v458 = vmax.f32 %v446, 0.0
        %v459 = vmax.f32 %v448, 0.0
        %v460 = vmax.f32 %v450, 0.0
        %v461 = vmax.f32 %v452, 0.0
        %v462 = vpack.c.bf16 %v456, %v454
        %v463 = vpack.c.bf16 %v457, %v455
        %v464 = vpack.c.bf16 %v460, %v458
        %v465 = vpack.c.bf16 %v461, %v459
        %v466 = vld [vmem:[%s4] sm:$0xff]
        %v467 = vld [vmem:[%s4 + $0x8] sm:$0xff]
        %v468 = vld [vmem:[%s4 + $0x10] sm:$0xff]
        %v469 = vld [vmem:[%s4 + $0x18] sm:$0xff]
        %v470 = vld [vmem:[%s4 + $0x20] sm:$0xff]
        %v471 = vld [vmem:[%s4 + $0x28] sm:$0xff]
        %v472 = vld [vmem:[%s4 + $0x30] sm:$0xff]
        %v473 = vld [vmem:[%s4 + $0x38] sm:$0xff]
        %v474 = vld [vmem:[%s4 + $0x40] sm:$0xff]
        %v475 = vld [vmem:[%s4 + $0x48] sm:$0xff]
        %v476 = vld [vmem:[%s4 + $0x50] sm:$0xff]
        %v477 = vld [vmem:[%s4 + $0x58] sm:$0xff]
        %v478 = vld [vmem:[%s4 + $0x60] sm:$0xff]
        %v479 = vld [vmem:[%s4 + $0x68] sm:$0xff]
        %v480 = vld [vmem:[%s4 + $0x70] sm:$0xff]
        %v481 = vld [vmem:[%s4 + $0x78] sm:$0xff]
        %v482 = vld [vmem:[%s4 + $0x80] sm:$0xff]
        %v483 = vld [vmem:[%s4 + $0x88] sm:$0xff]
        %v484 = vld [vmem:[%s4 + $0x90] sm:$0xff]
        %v485 = vld [vmem:[%s4 + $0x98] sm:$0xff]
        %v486 = vld [vmem:[%s4 + $0xa0] sm:$0xff]
        %v487 = vld [vmem:[%s4 + $0xa8] sm:$0xff]
        %v488 = vld [vmem:[%s4 + $0xb0] sm:$0xff]
        %v489 = vld [vmem:[%s4 + $0xb8] sm:$0xff]
        %v490 = vld [vmem:[%s4 + $0xc0] sm:$0xff]
        %v491 = vld [vmem:[%s4 + $0xc8] sm:$0xff]
        %v492 = vld [vmem:[%s4 + $0xd0] sm:$0xff]
        %v493 = vld [vmem:[%s4 + $0xd8] sm:$0xff]
        %v494 = vld [vmem:[%s4 + $0xe0] sm:$0xff]
        %v495 = vld [vmem:[%s4 + $0xe8] sm:$0xff]
        %v496 = vld [vmem:[%s4 + $0xf0] sm:$0xff]
        %v497 = vld [vmem:[%s4 + $0xf8] sm:$0xff]
        %v498 = vld [vmem:[%s5] sm:$0x3]
        %v500 = vlaneseq
        %v501 = vshrl.u32 %v500, 7
        %v502 = vsub.s32 0, %v501
        %v503 = vrot.slane %v498, %v502
        %v504 = vlaneseq
        %v505 = vshrl.u32 %v504, 7
        %v506 = vsub.s32 1, %v505
        %v507 = vrot.slane %v498, %v506
        %v542 = vunpack.c.l.b16 %v466
        %v543 = vunpack.c.h.b16 %v466
        %v544 = vunpack.c.l.b16 %v467
        %v545 = vunpack.c.h.b16 %v467
        %v546 = vunpack.c.l.b16 %v468
        %v547 = vunpack.c.h.b16 %v468
        %v548 = vunpack.c.l.b16 %v469
        %v549 = vunpack.c.h.b16 %v469
        %v550 = vunpack.c.l.b16 %v470
        %v551 = vunpack.c.h.b16 %v470
        %v552 = vunpack.c.l.b16 %v471
        %v553 = vunpack.c.h.b16 %v471
        %v554 = vunpack.c.l.b16 %v472
        %v555 = vunpack.c.h.b16 %v472
        %v556 = vunpack.c.l.b16 %v473
        %v557 = vunpack.c.h.b16 %v473
        %v558 = vunpack.c.l.b16 %v474
        %v559 = vunpack.c.h.b16 %v474
        %v560 = vunpack.c.l.b16 %v475
        %v561 = vunpack.c.h.b16 %v475
        %v562 = vunpack.c.l.b16 %v476
        %v563 = vunpack.c.h.b16 %v476
        %v564 = vunpack.c.l.b16 %v477
        %v565 = vunpack.c.h.b16 %v477
        %v566 = vunpack.c.l.b16 %v478
        %v567 = vunpack.c.h.b16 %v478
        %v568 = vunpack.c.l.b16 %v479
        %v569 = vunpack.c.h.b16 %v479
        %v570 = vunpack.c.l.b16 %v480
        %v571 = vunpack.c.h.b16 %v480
        %v572 = vunpack.c.l.b16 %v481
        %v573 = vunpack.c.h.b16 %v481
        %v574 = vunpack.c.l.b16 %v482
        %v575 = vunpack.c.h.b16 %v482
        %v576 = vunpack.c.l.b16 %v483
        %v577 = vunpack.c.h.b16 %v483
        %v578 = vunpack.c.l.b16 %v484
        %v579 = vunpack.c.h.b16 %v484
        %v580 = vunpack.c.l.b16 %v485
        %v581 = vunpack.c.h.b16 %v485
        %v582 = vunpack.c.l.b16 %v486
        %v583 = vunpack.c.h.b16 %v486
        %v584 = vunpack.c.l.b16 %v487
        %v585 = vunpack.c.h.b16 %v487
        %v586 = vunpack.c.l.b16 %v488
        %v587 = vunpack.c.h.b16 %v488
        %v588 = vunpack.c.l.b16 %v489
        %v589 = vunpack.c.h.b16 %v489
        %v590 = vunpack.c.l.b16 %v490
        %v591 = vunpack.c.h.b16 %v490
        %v592 = vunpack.c.l.b16 %v491
        %v593 = vunpack.c.h.b16 %v491
        %v594 = vunpack.c.l.b16 %v492
        %v595 = vunpack.c.h.b16 %v492
        %v596 = vunpack.c.l.b16 %v493
        %v597 = vunpack.c.h.b16 %v493
        %v598 = vunpack.c.l.b16 %v494
        %v599 = vunpack.c.h.b16 %v494
        %v600 = vunpack.c.l.b16 %v495
        %v601 = vunpack.c.h.b16 %v495
        %v602 = vunpack.c.l.b16 %v496
        %v603 = vunpack.c.h.b16 %v496
        %v604 = vunpack.c.l.b16 %v497
        %v605 = vunpack.c.h.b16 %v497
        %v606 = vpack.c.b16 %v544, %v542
        %v607 = vpack.c.b16 %v545, %v543
        %v608 = vpack.c.b16 %v548, %v546
        %v609 = vpack.c.b16 %v549, %v547
        %v610 = vpack.c.b16 %v552, %v550
        %v611 = vpack.c.b16 %v553, %v551
        %v612 = vpack.c.b16 %v556, %v554
        %v613 = vpack.c.b16 %v557, %v555
        %v614 = vpack.c.b16 %v560, %v558
        %v615 = vpack.c.b16 %v561, %v559
        %v616 = vpack.c.b16 %v564, %v562
        %v617 = vpack.c.b16 %v565, %v563
        %v618 = vpack.c.b16 %v568, %v566
        %v619 = vpack.c.b16 %v569, %v567
        %v620 = vpack.c.b16 %v572, %v570
        %v621 = vpack.c.b16 %v573, %v571
        %v622 = vpack.c.b16 %v576, %v574
        %v623 = vpack.c.b16 %v577, %v575
        %v624 = vpack.c.b16 %v580, %v578
        %v625 = vpack.c.b16 %v581, %v579
        %v626 = vpack.c.b16 %v584, %v582
        %v627 = vpack.c.b16 %v585, %v583
        %v628 = vpack.c.b16 %v588, %v586
        %v629 = vpack.c.b16 %v589, %v587
        %v630 = vpack.c.b16 %v592, %v590
        %v631 = vpack.c.b16 %v593, %v591
        %v632 = vpack.c.b16 %v596, %v594
        %v633 = vpack.c.b16 %v597, %v595
        %v634 = vpack.c.b16 %v600, %v598
        %v635 = vpack.c.b16 %v601, %v599
        %v636 = vpack.c.b16 %v604, %v602
        %v637 = vpack.c.b16 %v605, %v603
        %670 = vmatprep.subr.bf16.mxu0 %v621
        %671 = vmatpush1.bf16.msra.mxu0 %v620
        %672 = vmatprep.subr.bf16.mxu0 %v619
        %673 = vmatpush1.bf16.msra.mxu0 %v618
        %674 = vmatprep.subr.bf16.mxu0 %v617
        %675 = vmatpush1.bf16.msra.mxu0 %v616
        %676 = vmatprep.subr.bf16.mxu0 %v615
        %677 = vmatpush1.bf16.msra.mxu0 %v614
        %678 = vmatprep.subr.bf16.mxu0 %v613
        %679 = vmatpush1.bf16.msra.mxu0 %v612
        %680 = vmatprep.subr.bf16.mxu0 %v611
        %681 = vmatpush1.bf16.msra.mxu0 %v610
        %682 = vmatprep.subr.bf16.mxu0 %v609
        %683 = vmatpush1.bf16.msra.mxu0 %v608
        %684 = vmatprep.subr.bf16.mxu0 %v607
        %685 = vmatpush1.bf16.msra.mxu0 %v606
        %686 = vmatprep.subr.bf16.mxu0 %v637
        %687 = vmatpush2.bf16.msra.mxu0 %v636
        %688 = vmatprep.subr.bf16.mxu0 %v635
        %689 = vmatpush2.bf16.msra.mxu0 %v634
        %690 = vmatprep.subr.bf16.mxu0 %v633
        %691 = vmatpush2.bf16.msra.mxu0 %v632
        %692 = vmatprep.subr.bf16.mxu0 %v631
        %693 = vmatpush2.bf16.msra.mxu0 %v630
        %694 = vmatprep.subr.bf16.mxu0 %v629
        %695 = vmatpush2.bf16.msra.mxu0 %v628
        %696 = vmatprep.subr.bf16.mxu0 %v627
        %697 = vmatpush2.bf16.msra.mxu0 %v626
        %698 = vmatprep.subr.bf16.mxu0 %v625
        %699 = vmatpush2.bf16.msra.mxu0 %v624
        %700 = vmatprep.subr.bf16.mxu0 %v623
        %701 = vmatpush2.bf16.msra.mxu0 %v622
        %702 = vmatprep.mubr.bf16.mxu0 %v463
        %703 = vmatmul.mubr.bf16.gmra.mxu0 %v462
        %v704 = vpop.f32.mrf.mxu0
        %v705 = vadd.f32 %v503, %v704
        %v706 = vpop.f32.mrf.mxu0
        %v707 = vadd.f32 %v507, %v706
        %v708 = vpop.f32.mrf.mxu0
        %v709 = vadd.f32 %v503, %v708
        %v710 = vpop.f32.mrf.mxu0
        %v711 = vadd.f32 %v507, %v710
        %712 = vmatprep.mubr.bf16.mxu0 %v465
        %713 = vmatmul.mubr.bf16.gmra.mxu0 %v464
        %v714 = vpop.f32.mrf.mxu0
        %v715 = vadd.f32 %v503, %v714
        %v716 = vpop.f32.mrf.mxu0
        %v717 = vadd.f32 %v507, %v716
        %v718 = vpop.f32.mrf.mxu0
        %v719 = vadd.f32 %v503, %v718
        %v720 = vpop.f32.mrf.mxu0
        %v721 = vadd.f32 %v507, %v720
        %722 = vdwg.mxu0
        %v723 = vmax.f32 %v705, 0.0
        %v724 = vmax.f32 %v707, 0.0
        %v725 = vmax.f32 %v709, 0.0
        %v726 = vmax.f32 %v711, 0.0
        %v727 = vmax.f32 %v715, 0.0
        %v728 = vmax.f32 %v717, 0.0
        %v729 = vmax.f32 %v719, 0.0
        %v730 = vmax.f32 %v721, 0.0
        %v731 = vpack.c.bf16 %v725, %v723
        %v732 = vpack.c.bf16 %v726, %v724
        %v733 = vpack.c.bf16 %v729, %v727
        %v734 = vpack.c.bf16 %v730, %v728
        %v735 = vld [vmem:[%s6] sm:$0xf]
        %v736 = vld [vmem:[%s6 + $0x4] sm:$0xf]
        %v737 = vld [vmem:[%s6 + $0x8] sm:$0xf]
        %v738 = vld [vmem:[%s6 + $0xc] sm:$0xf]
        %v739 = vld [vmem:[%s6 + $0x10] sm:$0xf]
        %v740 = vld [vmem:[%s6 + $0x14] sm:$0xf]
        %v741 = vld [vmem:[%s6 + $0x18] sm:$0xf]
        %v742 = vld [vmem:[%s6 + $0x1c] sm:$0xf]
        %v743 = vld [vmem:[%s6 + $0x20] sm:$0xf]
        %v744 = vld [vmem:[%s6 + $0x24] sm:$0xf]
        %v745 = vld [vmem:[%s6 + $0x28] sm:$0xf]
        %v746 = vld [vmem:[%s6 + $0x2c] sm:$0xf]
        %v747 = vld [vmem:[%s6 + $0x30] sm:$0xf]
        %v748 = vld [vmem:[%s6 + $0x34] sm:$0xf]
        %v749 = vld [vmem:[%s6 + $0x38] sm:$0xf]
        %v750 = vld [vmem:[%s6 + $0x3c] sm:$0xf]
        %v751 = vld [vmem:[%s6 + $0x40] sm:$0xf]
        %v752 = vld [vmem:[%s6 + $0x44] sm:$0xf]
        %v753 = vld [vmem:[%s6 + $0x48] sm:$0xf]
        %v754 = vld [vmem:[%s6 + $0x4c] sm:$0xf]
        %v755 = vld [vmem:[%s6 + $0x50] sm:$0xf]
        %v756 = vld [vmem:[%s6 + $0x54] sm:$0xf]
        %v757 = vld [vmem:[%s6 + $0x58] sm:$0xf]
        %v758 = vld [vmem:[%s6 + $0x5c] sm:$0xf]
        %v759 = vld [vmem:[%s6 + $0x60] sm:$0xf]
        %v760 = vld [vmem:[%s6 + $0x64] sm:$0xf]
        %v761 = vld [vmem:[%s6 + $0x68] sm:$0xf]
        %v762 = vld [vmem:[%s6 + $0x6c] sm:$0xf]
        %v763 = vld [vmem:[%s6 + $0x70] sm:$0xf]
        %v764 = vld [vmem:[%s6 + $0x74] sm:$0xf]
        %v765 = vld [vmem:[%s6 + $0x78] sm:$0xf]
        %v766 = vld [vmem:[%s6 + $0x7c] sm:$0xf]
        %v767 = vld [vmem:[%s7] sm:$0x1]
        %v769 = vlaneseq
        %v770 = vshrl.u32 %v769, 7
        %v771 = vsub.s32 0, %v770
        %v772 = vrot.slane %v767, %v771
        %v806 = vunpack.c.l.b16 %v735
        %v807 = vunpack.c.l.b16 %v736
        %v808 = vunpack.c.l.b16 %v737
        %v809 = vunpack.c.l.b16 %v738
        %v810 = vunpack.c.l.b16 %v739
        %v811 = vunpack.c.l.b16 %v740
        %v812 = vunpack.c.l.b16 %v741
        %v813 = vunpack.c.l.b16 %v742
        %v814 = vunpack.c.l.b16 %v743
        %v815 = vunpack.c.l.b16 %v744
        %v816 = vunpack.c.l.b16 %v745
        %v817 = vunpack.c.l.b16 %v746
        %v818 = vunpack.c.l.b16 %v747
        %v819 = vunpack.c.l.b16 %v748
        %v820 = vunpack.c.l.b16 %v749
        %v821 = vunpack.c.l.b16 %v750
        %v822 = vunpack.c.l.b16 %v751
        %v823 = vunpack.c.l.b16 %v752
        %v824 = vunpack.c.l.b16 %v753
        %v825 = vunpack.c.l.b16 %v754
        %v826 = vunpack.c.l.b16 %v755
        %v827 = vunpack.c.l.b16 %v756
        %v828 = vunpack.c.l.b16 %v757
        %v829 = vunpack.c.l.b16 %v758
        %v830 = vunpack.c.l.b16 %v759
        %v831 = vunpack.c.l.b16 %v760
        %v832 = vunpack.c.l.b16 %v761
        %v833 = vunpack.c.l.b16 %v762
        %v834 = vunpack.c.l.b16 %v763
        %v835 = vunpack.c.l.b16 %v764
        %v836 = vunpack.c.l.b16 %v765
        %v837 = vunpack.c.l.b16 %v766
        %v838 = vpack.c.b16 %v807, %v806
        %v839 = vpack.c.b16 %v809, %v808
        %v840 = vpack.c.b16 %v811, %v810
        %v841 = vpack.c.b16 %v813, %v812
        %v842 = vpack.c.b16 %v815, %v814
        %v843 = vpack.c.b16 %v817, %v816
        %v844 = vpack.c.b16 %v819, %v818
        %v845 = vpack.c.b16 %v821, %v820
        %v846 = vpack.c.b16 %v823, %v822
        %v847 = vpack.c.b16 %v825, %v824
        %v848 = vpack.c.b16 %v827, %v826
        %v849 = vpack.c.b16 %v829, %v828
        %v850 = vpack.c.b16 %v831, %v830
        %v851 = vpack.c.b16 %v833, %v832
        %v852 = vpack.c.b16 %v835, %v834
        %v853 = vpack.c.b16 %v837, %v836
        %870 = vmatprep.subr.bf16.mxu0 0
        %871 = vmatpush1.bf16.msra.mxu0 %v845
        %872 = vmatprep.subr.bf16.mxu0 0
        %873 = vmatpush1.bf16.msra.mxu0 %v844
        %874 = vmatprep.subr.bf16.mxu0 0
        %875 = vmatpush1.bf16.msra.mxu0 %v843
        %876 = vmatprep.subr.bf16.mxu0 0
        %877 = vmatpush1.bf16.msra.mxu0 %v842
        %878 = vmatprep.subr.bf16.mxu0 0
        %879 = vmatpush1.bf16.msra.mxu0 %v841
        %880 = vmatprep.subr.bf16.mxu0 0
        %881 = vmatpush1.bf16.msra.mxu0 %v840
        %882 = vmatprep.subr.bf16.mxu0 0
        %883 = vmatpush1.bf16.msra.mxu0 %v839
        %884 = vmatprep.subr.bf16.mxu0 0
        %885 = vmatpush1.bf16.msra.mxu0 %v838
        %886 = vmatprep.subr.bf16.mxu0 0
        %887 = vmatpush2.bf16.msra.mxu0 %v853
        %888 = vmatprep.subr.bf16.mxu0 0
        %889 = vmatpush2.bf16.msra.mxu0 %v852
        %890 = vmatprep.subr.bf16.mxu0 0
        %891 = vmatpush2.bf16.msra.mxu0 %v851
        %892 = vmatprep.subr.bf16.mxu0 0
        %893 = vmatpush2.bf16.msra.mxu0 %v850
        %894 = vmatprep.subr.bf16.mxu0 0
        %895 = vmatpush2.bf16.msra.mxu0 %v849
        %896 = vmatprep.subr.bf16.mxu0 0
        %897 = vmatpush2.bf16.msra.mxu0 %v848
        %898 = vmatprep.subr.bf16.mxu0 0
        %899 = vmatpush2.bf16.msra.mxu0 %v847
        %900 = vmatprep.subr.bf16.mxu0 0
        %901 = vmatpush2.bf16.msra.mxu0 %v846
        %902 = vmatprep.mubr.bf16.mxu0 %v732
        %903 = vmatmul.mubr.bf16.gmra.mxu0 %v731
        %v904 = vpop.f32.mrf.mxu0
        %v905 = vadd.f32 %v772, %v904
        %v906 = vpop.f32.mrf.mxu0
        %v907 = vpop.f32.mrf.mxu0
        %v908 = vadd.f32 %v772, %v907
        %v909 = vpop.f32.mrf.mxu0
        %910 = vmatprep.mubr.bf16.mxu0 %v734
        %911 = vmatmul.mubr.bf16.gmra.mxu0 %v733
        %v912 = vpop.f32.mrf.mxu0
        %v913 = vadd.f32 %v772, %v912
        %v914 = vpop.f32.mrf.mxu0
        %v915 = vpop.f32.mrf.mxu0
        %v916 = vadd.f32 %v772, %v915
        %v917 = vpop.f32.mrf.mxu0
        %918 = vdwg.mxu0
        %v919 = vld [vmem:[%s341] sm:$0xff]
        %v920 = vld [vmem:[%s341 + $0x8] sm:$0xff]
        %v921 = vld [vmem:[%s341 + $0x10] sm:$0xff]
        %v922 = vld [vmem:[%s341 + $0x18] sm:$0xff]
        %v923 = vsub.f32 %v905, %v919
        %v924 = vsub.f32 %v908, %v920
        %v925 = vsub.f32 %v913, %v921
        %v926 = vsub.f32 %v916, %v922
        %v927 = vmul.f32 %v923, %v923
        %v928 = vmul.f32 %v924, %v924
        %v929 = vmul.f32 %v925, %v925
        %v930 = vmul.f32 %v926, %v926
        %vm931 = vcmask 130048
        %v932 = vsel %vm931, %v927, 0.0
        %v933 = vsel %vm931, %v928, 0.0
        %v934 = vadd.f32 %v932, %v933
        %v935 = vsel %vm931, %v929, 0.0
        %v936 = vadd.f32 %v934, %v935
        %v937 = vsel %vm931, %v930, 0.0
        %v938 = vadd.f32 %v936, %v937
        %939 = vadd.xlane.f32.xlu0 %v938
        %v940 = vpop.xlane.xlu0 %939
        %v941 = vrot.slane %v940, 4
        %v942 = vadd.f32 %v940, %v941
        %v943 = vrot.slane %v942, 2
        %v944 = vadd.f32 %v942, %v943
        %v945 = vrot.slane %v944, 1
        %v946 = vadd.f32 %v944, %v945
        %s947 = vtos %v946
        %v948 = vstv %s947
        %949 = vst [vmem:[%s330] sm:$0xff] %v948
        %s950 = sand.u32 %s209, 1
        %s951 = scalar_lea.sflag [#allocation4], %s950
        %s952 = sand.u32 %s209, 1
        %s953 = smul.addr %s952, 8
        %s954 = scalar_lea.vmem [#allocation5], %s953
        // Predicated region
        $region57: #{tpu_custom_call.1} parent=51 // pred_check
          %p955 = pneg %p219
        $region58: #{tpu_custom_call.1} parent=51 // pred_check_branch
          %957 = sbr.rel (%p955) target = $region60
        $region59: #{tpu_custom_call.1} parent=51 // pred_region
          %s959 = ssub.s32 128, 128
          %960 = vsyncadd %s951, %s959
          %s961 = smul.addr %s23, 128
          %s962 = scalar_lea.hbm %s8, %s961
          %s964 = sshll.u32 %s954, 4
          %s965 = int_to_ptr.vmem [resolvable:$true] %s964
          %967 = dma.vmem_to_hbm [thread:$0]  %s965, 128, %s962, %s951
        $region60: #{tpu_custom_call.1} parent=51 // pred_fallthru
          _
      $region52: #{tpu_custom_call.1} parent=5 // pred_fallthru
        _
      %p968 = scmp.le.s32.totalorder 2, %s18
      // Predicated region
      $region61: #{tpu_custom_call.1} parent=5 // pred_check
        %p969 = pneg %p968
      $region62: #{tpu_custom_call.1} parent=5 // pred_check_branch
        %971 = sbr.rel (%p969) target = $region64
      $region63: #{tpu_custom_call.1} parent=5 // pred_region
        %s972 = ssub.s32 %s18, 2
        // Predicated region
        $region65: #{tpu_custom_call.1} parent=63 // pred_check
          %p973 = pneg %p225
        $region66: #{tpu_custom_call.1} parent=63 // pred_check_branch
          %975 = sbr.rel (%p973) target = $region68
        $region67: #{tpu_custom_call.1} parent=63 // pred_region
          %s976 = sand.u32 %s210, 1
          %s977 = scalar_lea.sflag [#allocation4], %s976
          %s978 = sand.u32 %s210, 1
          %s979 = smul.addr %s978, 8
          %s980 = scalar_lea.vmem [#allocation5], %s979
          %981 = dma.done %s977, 128
        $region68: #{tpu_custom_call.1} parent=63 // pred_fallthru
          _
      $region64: #{tpu_custom_call.1} parent=5 // pred_fallthru
        _
    $region6: #{tpu_custom_call.1} parent=1 // loop_footer
      %s22 = sadd.s32 1, %s18
    $region7: #{tpu_custom_call.1} parent=1 // loop_footer_branch
      %17 = sbr.rel target = $region3
    $region8: #{tpu_custom_call.1} parent=1 // loop_exit
      _
    %982 = vsyncpa [#allocation3], 1
    %s983 = scalar_lea.sflag [#allocation3], 1
    %984 = vsyncpa %s983, 1
    %985 = vsyncpa [#allocation4], 1
    %s986 = scalar_lea.sflag [#allocation4], 1
    %987 = vsyncpa %s986, 1

</llo_original>
